<compile_context>
chip_gen: v7x
topology: tpu7x:2x2x1
jax: 0.10.0
libtpu: 0.0.40
codegen_flags: <defaults>
</compile_context>

<pallas_src>
import functools

import jax
import jax.numpy as jnp
from jax import lax
from jax.experimental import pallas as pl
from jax.experimental.pallas import tpu as pltpu


def _ceil_to(x, m):
    return ((x + m - 1) // m) * m


def _lane_tile(x, n):
    """Replicate a lane-replicated (rows, 128) block n times along the lane axis."""
    if n == 1:
        return x
    return jnp.concatenate([x] * n, axis=1)


# ---------------------------------------------------------------------------
# Kernel 1: K/V linear projections, tiled over (batch, kv-seq-tiles).
# (Q is projected inside the flash kernel.)
# ---------------------------------------------------------------------------
def _kv_proj_kernel(wk_ref, bk_ref, wv_ref, bv_ref, xk_ref, xv_ref, k_ref, v_ref):
    k = jnp.dot(xk_ref[...], wk_ref[...], preferred_element_type=jnp.float32) + bk_ref[...]
    v = jnp.dot(xv_ref[...], wv_ref[...], preferred_element_type=jnp.float32) + bv_ref[...]
    k_ref[...] = k.astype(k_ref.dtype)
    v_ref[...] = v.astype(v_ref.dtype)


# ---------------------------------------------------------------------------
# Shared flash-attention pieces (online softmax, lane-replicated m/l scratch).
# ---------------------------------------------------------------------------
def _init_and_project_q(xq_ref, wq_ref, bq_ref, q_sc, m_sc, l_sc, acc_sc):
    m_sc[...] = jnp.full_like(m_sc, -jnp.inf)
    l_sc[...] = jnp.zeros_like(l_sc)
    acc_sc[...] = jnp.zeros_like(acc_sc)
    # Q projection (scale already folded into wq/bq): bf16 matmul, f32 accumulate.
    q = jnp.dot(xq_ref[...], wq_ref[...], preferred_element_type=jnp.float32) + bq_ref[...]
    q_sc[...] = q.astype(q_sc.dtype)


def _softmax_step(q, k_ref, v_ref, m_sc, l_sc, acc_sc, extra_mask):
    _, ap = acc_sc.shape
    ts_kv = k_ref.shape[0]
    # q @ k^T via dot_general contracting last dims (no XLU transpose of K).
    s = lax.dot_general(q, k_ref[...], (((1,), (1,)), ((), ())),
                        preferred_element_type=jnp.float32)            # (ts_q, ts_kv)
    if extra_mask is not None:
        s = jnp.where(extra_mask, -jnp.inf, s)

    m_prev = m_sc[...]                                                  # (ts_q, 128)
    m_cur = jnp.max(s, axis=-1, keepdims=True)                          # (ts_q, 1)
    m_next = jnp.maximum(m_prev, m_cur)                                 # (ts_q, 128)
    alpha = jnp.exp(m_prev - m_next)                                    # (ts_q, 128)
    p = jnp.exp(s - _lane_tile(m_next, ts_kv // 128))                   # (ts_q, ts_kv)
    l_cur = jnp.sum(p, axis=-1, keepdims=True)                          # (ts_q, 1)
    l_sc[...] = alpha * l_sc[...] + l_cur
    pv = jnp.dot(p.astype(v_ref.dtype), v_ref[...],
                 preferred_element_type=jnp.float32)                    # (ts_q, Ap)
    acc_sc[...] = acc_sc[...] * _lane_tile(alpha, ap // 128) + pv
    m_sc[...] = m_next


def _finalize(o_ref, l_sc, acc_sc):
    ap = acc_sc.shape[1]
    inv = 1.0 / l_sc[...]                    # exact: runs once per q tile
    o_ref[...] = (acc_sc[...] * _lane_tile(inv, ap // 128)).astype(o_ref.dtype)


# ---------------------------------------------------------------------------
# Kernel 2a: non-causal flash attention, grid = (batch, q-tiles, kv-tiles).
# ---------------------------------------------------------------------------
def _flash_dense_kernel(xq_ref, wq_ref, bq_ref, k_ref, v_ref, o_ref,
                        q_sc, m_sc, l_sc, acc_sc, *, ts_kv, s_kv, n_kv, kv_padded):
    ki = pl.program_id(2)

    @pl.when(ki == 0)
    def _():
        _init_and_project_q(xq_ref, wq_ref, bq_ref, q_sc, m_sc, l_sc, acc_sc)

    q = q_sc[...]
    ts_q = q_sc.shape[0]

    if kv_padded:
        # Padded columns live only in the last kv tile -> mask only there.
        @pl.when(ki == n_kv - 1)
        def _():
            col = (n_kv - 1) * ts_kv + lax.broadcasted_iota(jnp.int32, (ts_q, ts_kv), 1)
            _softmax_step(q, k_ref, v_ref, m_sc, l_sc, acc_sc, col >= s_kv)

        @pl.when(ki < n_kv - 1)
        def _():
            _softmax_step(q, k_ref, v_ref, m_sc, l_sc, acc_sc, None)
    else:
        _softmax_step(q, k_ref, v_ref, m_sc, l_sc, acc_sc, None)

    @pl.when(ki == n_kv - 1)
    def _():
        _finalize(o_ref, l_sc, acc_sc)


# ---------------------------------------------------------------------------
# Kernel 2b: causal flash attention over a flattened triangular schedule.
#   grid = (batch, T); scalar-prefetched qi/ki/last arrays drive the index_maps,
#   so kv tiles strictly above the diagonal are never fetched or stepped over.
# ---------------------------------------------------------------------------
def _flash_causal_kernel(qi_ref, ki_ref, last_ref,
                         xq_ref, wq_ref, bq_ref, k_ref, v_ref, o_ref,
                         q_sc, m_sc, l_sc, acc_sc, *, ts_q, ts_kv):
    t = pl.program_id(1)
    qi = qi_ref[t]
    ki = ki_ref[t]

    @pl.when(ki == 0)
    def _():
        _init_and_project_q(xq_ref, wq_ref, bq_ref, q_sc, m_sc, l_sc, acc_sc)

    q = q_sc[...]

    # Mask only tiles that touch/cross the diagonal; fully-below tiles skip the
    # iota/compare/select entirely.  (Padded kv columns are > any valid row index,
    # so the causal mask also covers them.)
    needs_mask = (ki * ts_kv + (ts_kv - 1)) > (qi * ts_q)

    @pl.when(needs_mask)
    def _():
        row = qi * ts_q + lax.broadcasted_iota(jnp.int32, (ts_q, ts_kv), 0)
        col = ki * ts_kv + lax.broadcasted_iota(jnp.int32, (ts_q, ts_kv), 1)
        _softmax_step(q, k_ref, v_ref, m_sc, l_sc, acc_sc, col > row)

    @pl.when(jnp.logical_not(needs_mask))
    def _():
        _softmax_step(q, k_ref, v_ref, m_sc, l_sc, acc_sc, None)

    @pl.when(last_ref[t] == 1)
    def _():
        _finalize(o_ref, l_sc, acc_sc)


# ---------------------------------------------------------------------------
# Wrapper
# ---------------------------------------------------------------------------
def scale_dot_product_attention(params, query, key, value,
                                padding_mask=None, look_ahead_mask=False,
                                tile_q=256, tile_kv=512):
    # TODO(synk): padding_mask (arbitrary-broadcast boolean masked_fill) is not wired
    # into the kernel; only padding_mask=None and the static look_ahead_mask are supported.
    assert padding_mask is None, "padding_mask not supported in this Pallas kernel"

    wq, bq, wk, bk, wv, bv = params
    B, Sq, E = query.shape
    Bk, Skv, Ek = key.shape
    assert value.shape == key.shape and Bk == B and Ek == E
    A = wq.shape[1]
    out_dtype = query.dtype
    scale = 1.0 / float(A) ** 0.5
    if look_ahead_mask:
        assert Sq == Skv, "look_ahead_mask requires equal query/key lengths"

    # ---- geometry: lane-dense feature dim, 128-multiple seq tiles ----
    # TODO(synk): attention_dim << 128 still pads to one 128-lane vreg; a multi-head
    # variant should pack heads along the lane dim instead of computing on zeros.
    Ap = _ceil_to(A, 128)
    tile_q = max(128, _ceil_to(tile_q, 128))
    tile_kv = max(128, _ceil_to(tile_kv, 128))

    ts_q = min(tile_q, _ceil_to(Sq, 128))
    # v7x has 2 TensorCores: make sure the parallel axes carry >= 2 work items.
    if B * (_ceil_to(Sq, ts_q) // ts_q) < 2 and ts_q > 128:
        ts_q = max(128, _ceil_to(ts_q // 2, 128))
    ts_kv = min(tile_kv, _ceil_to(Skv, 128))

    Sq_p = _ceil_to(Sq, ts_q)
    Skv_p = _ceil_to(Skv, ts_kv)
    n_q = Sq_p // ts_q
    n_kv = Skv_p // ts_kv
    kv_padded = Skv_p != Skv

    # ---- pad + cast matmul inputs to bf16; fold softmax scale into Q weights ----
    def pad_w(w, s=1.0):
        return (jnp.pad(w, ((0, 0), (0, Ap - A))) * s).astype(jnp.bfloat16)

    def pad_b(b, s=1.0):
        return (jnp.pad(b, (0, Ap - A)) * s).reshape(1, Ap).astype(jnp.float32)

    def pad_x(x, sp):
        return jnp.pad(x, ((0, 0), (0, sp - x.shape[1]), (0, 0))).astype(jnp.bfloat16)

    wq_p, bq_p = pad_w(wq, scale), pad_b(bq, scale)
    wk_p, bk_p = pad_w(wk), pad_b(bk)
    wv_p, bv_p = pad_w(wv), pad_b(bv)
    xq = pad_x(query, Sq_p)
    xk = pad_x(key, Skv_p)
    xv = pad_x(value, Skv_p)

    # ------------------------ 1) K/V projections ------------------------
    # TODO(synk): for very large embedding_dim the double-buffered (E,Ap) weights plus
    # (ts_kv,E) activation tiles may exceed v5e's 16 MiB / v7x's 32 MiB scoped VMEM;
    # add an E-reduction grid axis with an f32 accumulator in that regime.
    w_spec = pl.BlockSpec((E, Ap), lambda b, i: (0, 0))
    b_spec = pl.BlockSpec((1, Ap), lambda b, i: (0, 0))
    x_spec = pl.BlockSpec((None, ts_kv, E), lambda b, i: (b, i, 0))
    y_spec = pl.BlockSpec((None, ts_kv, Ap), lambda b, i: (b, i, 0))

    kv_shape = jax.ShapeDtypeStruct((B, Skv_p, Ap), jnp.bfloat16)
    k_p, v_p = pl.pallas_call(
        _kv_proj_kernel,
        out_shape=(kv_shape, kv_shape),
        grid_spec=pltpu.PrefetchScalarGridSpec(
            num_scalar_prefetch=0,
            grid=(B, n_kv),
            in_specs=[w_spec, b_spec, w_spec, b_spec, x_spec, x_spec],
            out_specs=(y_spec, y_spec),
        ),
        compiler_params=pltpu.CompilerParams(
            dimension_semantics=("parallel", "parallel")),
    )(wk_p, bk_p, wv_p, bv_p, xk, xv)

    # ----------------------------- 2) flash attention ---------------------------
    scratch = [pltpu.VMEM((ts_q, Ap), jnp.bfloat16),   # projected q tile
               pltpu.VMEM((ts_q, 128), jnp.float32),   # running max (lane-replicated)
               pltpu.VMEM((ts_q, 128), jnp.float32),   # running sum (lane-replicated)
               pltpu.VMEM((ts_q, Ap), jnp.float32)]    # f32 output accumulator

    if not look_ahead_mask:
        kernel = functools.partial(_flash_dense_kernel, ts_kv=ts_kv, s_kv=Skv,
                                   n_kv=n_kv, kv_padded=kv_padded)
        out = pl.pallas_call(
            kernel,
            out_shape=jax.ShapeDtypeStruct((B, Sq_p, Ap), out_dtype),
            grid_spec=pltpu.PrefetchScalarGridSpec(
                num_scalar_prefetch=0,
                grid=(B, n_q, n_kv),
                in_specs=[
                    pl.BlockSpec((None, ts_q, E), lambda b, qi, ki: (b, qi, 0)),
                    pl.BlockSpec((E, Ap), lambda b, qi, ki: (0, 0)),
                    pl.BlockSpec((1, Ap), lambda b, qi, ki: (0, 0)),
                    pl.BlockSpec((None, ts_kv, Ap), lambda b, qi, ki: (b, ki, 0)),
                    pl.BlockSpec((None, ts_kv, Ap), lambda b, qi, ki: (b, ki, 0)),
                ],
                out_specs=pl.BlockSpec((None, ts_q, Ap), lambda b, qi, ki: (b, qi, 0)),
                scratch_shapes=scratch,
            ),
            compiler_params=pltpu.CompilerParams(
                dimension_semantics=("parallel", "parallel", "arbitrary")),
        )(xq, wq_p, bq_p, k_p, v_p)
    else:
        # Flattened triangular schedule: per q tile, only the kv tiles that contain
        # any unmasked column.  Finalize on the last needed kv tile.
        qi_list, ki_list, last_list = [], [], []
        for qi in range(n_q):
            nk = min(((qi + 1) * ts_q - 1) // ts_kv + 1, n_kv)
            for ki in range(nk):
                qi_list.append(qi)
                ki_list.append(ki)
                last_list.append(1 if ki == nk - 1 else 0)
        qi_arr = jnp.asarray(qi_list, dtype=jnp.int32)
        ki_arr = jnp.asarray(ki_list, dtype=jnp.int32)
        last_arr = jnp.asarray(last_list, dtype=jnp.int32)
        num_steps = len(qi_list)

        kernel = functools.partial(_flash_causal_kernel, ts_q=ts_q, ts_kv=ts_kv)
        out = pl.pallas_call(
            kernel,
            out_shape=jax.ShapeDtypeStruct((B, Sq_p, Ap), out_dtype),
            grid_spec=pltpu.PrefetchScalarGridSpec(
                num_scalar_prefetch=3,
                grid=(B, num_steps),
                in_specs=[
                    pl.BlockSpec((None, ts_q, E),
                                 lambda b, t, qi, ki, lst: (b, qi[t], 0)),
                    pl.BlockSpec((E, Ap), lambda b, t, qi, ki, lst: (0, 0)),
                    pl.BlockSpec((1, Ap), lambda b, t, qi, ki, lst: (0, 0)),
                    pl.BlockSpec((None, ts_kv, Ap),
                                 lambda b, t, qi, ki, lst: (b, ki[t], 0)),
                    pl.BlockSpec((None, ts_kv, Ap),
                                 lambda b, t, qi, ki, lst: (b, ki[t], 0)),
                ],
                out_specs=pl.BlockSpec((None, ts_q, Ap),
                                       lambda b, t, qi, ki, lst: (b, qi[t], 0)),
                scratch_shapes=scratch,
            ),
            compiler_params=pltpu.CompilerParams(
                dimension_semantics=("parallel", "arbitrary")),
        )(qi_arr, ki_arr, last_arr, xq, wq_p, bq_p, k_p, v_p)

    return out[:, :Sq, :A]


def init_params(key, embedding_dim, attention_dim, dtype=jnp.float32):
    # nn.Linear-style init: U(-1/sqrt(fan_in), 1/sqrt(fan_in)).
    ks = jax.random.split(key, 6)
    bound = 1.0 / jnp.sqrt(jnp.float32(embedding_dim))
    u = lambda k, shape: jax.random.uniform(k, shape, dtype, -bound, bound)
    wq = u(ks[0], (embedding_dim, attention_dim)); bq = u(ks[1], (attention_dim,))
    wk = u(ks[2], (embedding_dim, attention_dim)); bk = u(ks[3], (attention_dim,))
    wv = u(ks[4], (embedding_dim, attention_dim)); bv = u(ks[5], (attention_dim,))
    return (wq, bq, wk, bk, wv, bv)


def _reference(params, query, key, value, look_ahead_mask=False):
    wq, bq, wk, bk, wv, bv = params
    q = query @ wq + bq
    k = key @ wk + bk
    v = value @ wv + bv
    qk = jnp.einsum("bqd,bkd->bqk", q, k) / jnp.sqrt(jnp.float32(wq.shape[1]))
    if look_ahead_mask:
        s = qk.shape[-1]
        mask = jnp.tril(jnp.ones((s, s)))
        qk = qk + jnp.where(mask == 0, -jnp.inf, 0.0)
    p = jax.nn.softmax(qk, axis=-1)
    return jnp.einsum("bqk,bkd->bqd", p, v)


if __name__ == "__main__":
    batch, seq, embedding_dim, attention_dim = 2, 8, 32, 16

    root = jax.random.PRNGKey(0)
    k_params, k_q, k_k, k_v = jax.random.split(root, 4)
    params = init_params(k_params, embedding_dim, attention_dim)

    query = jax.random.normal(k_q, (batch, seq, embedding_dim), jnp.float32)
    key = jax.random.normal(k_k, (batch, seq, embedding_dim), jnp.float32)
    value = jax.random.normal(k_v, (batch, seq, embedding_dim), jnp.float32)

    out = jax.block_until_ready(
        scale_dot_product_attention(params, query, key, value))
    out_causal = jax.block_until_ready(
        scale_dot_product_attention(params, query, key, value, look_ahead_mask=True))

    ref = _reference(params, query, key, value, look_ahead_mask=False)
    ref_causal = _reference(params, query, key, value, look_ahead_mask=True)

    assert out.shape == (batch, seq, attention_dim)
    # bf16 matmul inputs -> loosened tolerance vs f32 reference.
    assert jnp.allclose(out, ref, atol=3e-2, rtol=3e-2)
    assert jnp.allclose(out_causal, ref_causal, atol=3e-2, rtol=3e-2)

    # Multi-tile exercise: 3 q-tiles x 3 kv-tiles, padded seq, triangular causal schedule.
    seq2 = 300
    k_q2, k_k2, k_v2 = jax.random.split(jax.random.PRNGKey(1), 3)
    q2 = jax.random.normal(k_q2, (batch, seq2, embedding_dim), jnp.float32)
    k2 = jax.random.normal(k_k2, (batch, seq2, embedding_dim), jnp.float32)
    v2 = jax.random.normal(k_v2, (batch, seq2, embedding_dim), jnp.float32)

    out2 = jax.block_until_ready(
        scale_dot_product_attention(params, q2, k2, v2, tile_q=128, tile_kv=128))
    out2_causal = jax.block_until_ready(
        scale_dot_product_attention(params, q2, k2, v2, look_ahead_mask=True,
                                    tile_q=128, tile_kv=128))
    ref2 = _reference(params, q2, k2, v2, look_ahead_mask=False)
    ref2_causal = _reference(params, q2, k2, v2, look_ahead_mask=True)
    assert jnp.allclose(out2, ref2, atol=3e-2, rtol=3e-2)
    assert jnp.allclose(out2_causal, ref2_causal, atol=3e-2, rtol=3e-2)

    print("KERNEL_OK")
</pallas_src>

<mosaic_0001>
module attributes {stable_mosaic.version = 11 : i64} {
  func.func @_kv_proj_kernel(%arg0: i32, %arg1: i32, %arg2: memref<32x128xbf16, #tpu.memory_space<vmem>>, %arg3: memref<1x128xf32, #tpu.memory_space<vmem>>, %arg4: memref<32x128xbf16, #tpu.memory_space<vmem>>, %arg5: memref<1x128xf32, #tpu.memory_space<vmem>>, %arg6: memref<1x128x32xbf16, #tpu.memory_space<vmem>>, %arg7: memref<1x128x32xbf16, #tpu.memory_space<vmem>>, %arg8: memref<1x128x128xbf16, #tpu.memory_space<vmem>>, %arg9: memref<1x128x128xbf16, #tpu.memory_space<vmem>>) attributes {dimension_semantics = [#tpu.dimension_semantics<parallel>, #tpu.dimension_semantics<parallel>], iteration_bounds = array<i64: 2, 1>, scalar_prefetch = 0 : i64, scratch_operands = 0 : i64, tpu.core_type = #tpu.core_type<tc>, window_params = [{pipeline_mode = #tpu.pipeline_mode<synchronous>, transform_indices = @transform_0, window_bounds = array<i64: 32, 128>}, {pipeline_mode = #tpu.pipeline_mode<synchronous>, transform_indices = @transform_1, window_bounds = array<i64: 1, 128>}, {pipeline_mode = #tpu.pipeline_mode<synchronous>, transform_indices = @transform_2, window_bounds = array<i64: 32, 128>}, {pipeline_mode = #tpu.pipeline_mode<synchronous>, transform_indices = @transform_3, window_bounds = array<i64: 1, 128>}, {transform_indices = @transform_4, window_bounds = array<i64: 1, 128, 32>}, {transform_indices = @transform_5, window_bounds = array<i64: 1, 128, 32>}, {transform_indices = @transform_6, window_bounds = array<i64: 1, 128, 128>}, {transform_indices = @transform_7, window_bounds = array<i64: 1, 128, 128>}]} {
    %c0 = arith.constant 0 : index
    %c0_0 = arith.constant 0 : index
    %c0_1 = arith.constant 0 : index
    %0 = vector.load %arg6[%c0, %c0_0, %c0_1] : memref<1x128x32xbf16, #tpu.memory_space<vmem>>, vector<1x128x32xbf16>
    %1 = vector.shape_cast %0 : vector<1x128x32xbf16> to vector<128x32xbf16>
    %c0_2 = arith.constant 0 : index
    %c0_3 = arith.constant 0 : index
    %2 = vector.load %arg2[%c0_2, %c0_3] : memref<32x128xbf16, #tpu.memory_space<vmem>>, vector<32x128xbf16>
    %cst = arith.constant dense<0.000000e+00> : vector<128x128xf32>
    %3 = tpu.matmul %1, %2, %cst {dimension_numbers = #tpu.dot_dimension_numbers<[1], [0], [0], [1], [0, 0, 1, 1], [], []>} : vector<128x32xbf16>, vector<32x128xbf16>, vector<128x128xf32> -> vector<128x128xf32>
    %c0_4 = arith.constant 0 : index
    %c0_5 = arith.constant 0 : index
    %4 = vector.load %arg3[%c0_4, %c0_5] : memref<1x128xf32, #tpu.memory_space<vmem>>, vector<1x128xf32>
    %5 = vector.broadcast %4 : vector<1x128xf32> to vector<128x128xf32>
    %6 = arith.addf %3, %5 : vector<128x128xf32>
    %c0_6 = arith.constant 0 : index
    %c0_7 = arith.constant 0 : index
    %c0_8 = arith.constant 0 : index
    %7 = vector.load %arg7[%c0_6, %c0_7, %c0_8] : memref<1x128x32xbf16, #tpu.memory_space<vmem>>, vector<1x128x32xbf16>
    %8 = vector.shape_cast %7 : vector<1x128x32xbf16> to vector<128x32xbf16>
    %c0_9 = arith.constant 0 : index
    %c0_10 = arith.constant 0 : index
    %9 = vector.load %arg4[%c0_9, %c0_10] : memref<32x128xbf16, #tpu.memory_space<vmem>>, vector<32x128xbf16>
    %cst_11 = arith.constant dense<0.000000e+00> : vector<128x128xf32>
    %10 = tpu.matmul %8, %9, %cst_11 {dimension_numbers = #tpu.dot_dimension_numbers<[1], [0], [0], [1], [0, 0, 1, 1], [], []>} : vector<128x32xbf16>, vector<32x128xbf16>, vector<128x128xf32> -> vector<128x128xf32>
    %c0_12 = arith.constant 0 : index
    %c0_13 = arith.constant 0 : index
    %11 = vector.load %arg5[%c0_12, %c0_13] : memref<1x128xf32, #tpu.memory_space<vmem>>, vector<1x128xf32>
    %12 = vector.broadcast %11 : vector<1x128xf32> to vector<128x128xf32>
    %13 = arith.addf %10, %12 : vector<128x128xf32>
    %14 = arith.truncf %6 : vector<128x128xf32> to vector<128x128xbf16>
    %c0_14 = arith.constant 0 : index
    %c0_15 = arith.constant 0 : index
    %c0_16 = arith.constant 0 : index
    %15 = vector.load %arg8[%c0_14, %c0_15, %c0_16] : memref<1x128x128xbf16, #tpu.memory_space<vmem>>, vector<1x128x128xbf16>
    %16 = vector.shape_cast %15 : vector<1x128x128xbf16> to vector<128x128xbf16>
    %17 = vector.shape_cast %14 : vector<128x128xbf16> to vector<1x128x128xbf16>
    tpu.vector_store %arg8[%c0_14, %c0_15, %c0_16], %17 {strides = array<i32>} : memref<1x128x128xbf16, #tpu.memory_space<vmem>>, vector<1x128x128xbf16>,
    %18 = arith.truncf %13 : vector<128x128xf32> to vector<128x128xbf16>
    %c0_17 = arith.constant 0 : index
    %c0_18 = arith.constant 0 : index
    %c0_19 = arith.constant 0 : index
    %19 = vector.load %arg9[%c0_17, %c0_18, %c0_19] : memref<1x128x128xbf16, #tpu.memory_space<vmem>>, vector<1x128x128xbf16>
    %20 = vector.shape_cast %19 : vector<1x128x128xbf16> to vector<128x128xbf16>
    %21 = vector.shape_cast %18 : vector<128x128xbf16> to vector<1x128x128xbf16>
    tpu.vector_store %arg9[%c0_17, %c0_18, %c0_19], %21 {strides = array<i32>} : memref<1x128x128xbf16, #tpu.memory_space<vmem>>, vector<1x128x128xbf16>,
    return
  }
  func.func @transform_0(%arg0: i32, %arg1: i32) -> (i32, i32) {
    %c0_i32 = arith.constant 0 : i32
    %c0_i32_0 = arith.constant 0 : i32
    %c0_i32_1 = arith.constant 0 : i32
    return %c0_i32, %c0_i32_0 : i32, i32
  }
  func.func @transform_1(%arg0: i32, %arg1: i32) -> (i32, i32) {
    %c0_i32 = arith.constant 0 : i32
    %c0_i32_0 = arith.constant 0 : i32
    %c0_i32_1 = arith.constant 0 : i32
    return %c0_i32, %c0_i32_0 : i32, i32
  }
  func.func @transform_2(%arg0: i32, %arg1: i32) -> (i32, i32) {
    %c0_i32 = arith.constant 0 : i32
    %c0_i32_0 = arith.constant 0 : i32
    %c0_i32_1 = arith.constant 0 : i32
    return %c0_i32, %c0_i32_0 : i32, i32
  }
  func.func @transform_3(%arg0: i32, %arg1: i32) -> (i32, i32) {
    %c0_i32 = arith.constant 0 : i32
    %c0_i32_0 = arith.constant 0 : i32
    %c0_i32_1 = arith.constant 0 : i32
    return %c0_i32, %c0_i32_0 : i32, i32
  }
  func.func @transform_4(%arg0: i32, %arg1: i32) -> (i32, i32, i32) {
    %c0_i32 = arith.constant 0 : i32
    %c0_i32_0 = arith.constant 0 : i32
    return %arg0, %arg1, %c0_i32 : i32, i32, i32
  }
  func.func @transform_5(%arg0: i32, %arg1: i32) -> (i32, i32, i32) {
    %c0_i32 = arith.constant 0 : i32
    %c0_i32_0 = arith.constant 0 : i32
    return %arg0, %arg1, %c0_i32 : i32, i32, i32
  }
  func.func @transform_6(%arg0: i32, %arg1: i32) -> (i32, i32, i32) {
    %c0_i32 = arith.constant 0 : i32
    %c0_i32_0 = arith.constant 0 : i32
    return %arg0, %arg1, %c0_i32 : i32, i32, i32
  }
  func.func @transform_7(%arg0: i32, %arg1: i32) -> (i32, i32, i32) {
    %c0_i32 = arith.constant 0 : i32
    %c0_i32_0 = arith.constant 0 : i32
    return %arg0, %arg1, %c0_i32 : i32, i32, i32
  }
}

</mosaic_0001>

<llo_original>
// kernel: tpu_custom_call.1
$region0: #{tpu_custom_call.1}
  #allocation0 [shape = 'u32[]', space=smem, size = 0x4, offset = 0x4, fixed_abs, tag = 'smem constant byte address 0x4 - core index']
  #allocation1 [shape = 'u32[144,128]{1,0:T(1,128)}', space=vmem, size = 0x12000, scoped, tag = 'internal scratch']
  %s0 = inlined_call_operand.vmem [shape: bf16[32,128], index: 0, kind: input, shape index: {}]
  %s1 = inlined_call_operand.vmem [shape: f32[1,128], index: 1, kind: input, shape index: {}]
  %s2 = inlined_call_operand.vmem [shape: bf16[32,128], index: 2, kind: input, shape index: {}]
  %s3 = inlined_call_operand.vmem [shape: f32[1,128], index: 3, kind: input, shape index: {}]
  %s4 = inlined_call_operand.vmem [shape: bf16[2,128,32], index: 4, kind: input, shape index: {}]
  %s5 = inlined_call_operand.vmem [shape: bf16[2,128,32], index: 5, kind: input, shape index: {}]
  %s6 = inlined_call_operand.hbm [shape: bf16[2,128,128], index: 6, kind: output, shape index: {0}]
  %s7 = inlined_call_operand.hbm [shape: bf16[2,128,128], index: 7, kind: output, shape index: {1}]
  %8 = xla_tuple %s6, %s7
  %s9 = sld [smem:[#allocation0]]
  $region65: #{tpu_custom_call.1} parent=0
    _
  %s11 = ssub.s32 1, %s9
  %s12 = scalar_select 0, %s11, %s9
  $region1: #{tpu_custom_call.1} parent=0
    #allocation2 [shape = 'u8[65536]{0}', space=vmem, size = 0x10000, scoped, tag = 'output window, operand 0']
    #allocation3 [shape = 's32[2]{0}', space=sflag, size = 0x8, scoped, tag = 'scoped memory for tpu_custom_call.1']
    #allocation4 [shape = 'u8[65536]{0}', space=vmem, size = 0x10000, scoped, tag = 'output window, operand 1']
    #allocation5 [shape = 's32[2]{0}', space=sflag, size = 0x8, scoped, tag = 'scoped memory for tpu_custom_call.1']
    %13 = vsyncpa [#allocation3], 0
    %s14 = scalar_lea.sflag [#allocation3], 1
    %15 = vsyncpa %s14, 0
    %16 = vsyncpa [#allocation5], 0
    %s17 = scalar_lea.sflag [#allocation5], 1
    %18 = vsyncpa %s17, 0
    loop: start=0, step=1, limit=4
    $region2: #{tpu_custom_call.1} parent=1 // loop_pre_header
      _
    $region3: #{tpu_custom_call.1} parent=1 // loop_header
      %s20 = sphi 0, %s24
      %p21 = scmp.ge.s32.totalorder %s20, 4
      %s27 = sphi 0, %s39
      %s28 = sphi 0, %s35
      %s29 = sphi 0, %s27
      %s30 = sphi 0, %s28
      %s31 = sphi 0, %s29
      %s32 = sphi 0, %s30
      %s40 = sphi 0, %s40
      %s42 = sphi 0, %s40
      %s43 = sphi 0, %s42
      %s57 = sphi 0, %s43
      %s61 = sphi 0, %s61
      %s63 = sphi 0, %s61
      %s64 = sphi 0, %s63
      %s78 = sphi 0, %s64
      %s82 = sphi 0, %s82
      %s84 = sphi 0, %s82
      %s85 = sphi 0, %s84
      %s99 = sphi 0, %s85
      %s103 = sphi 0, %s103
      %s105 = sphi 0, %s103
      %s106 = sphi 0, %s105
      %s120 = sphi 0, %s106
      %s128 = sphi 0, %s130
      %s131 = sphi 0, %s128
      %s132 = sphi 0, %s131
      %s148 = sphi 0, %s132
      %s156 = sphi 0, %s158
      %s159 = sphi 0, %s156
      %s160 = sphi 0, %s159
      %s176 = sphi 0, %s160
      %s184 = sphi 0, %s186
      %s187 = sphi 0, %s184
      %s188 = sphi 0, %s187
      %s204 = sphi 0, %s188
      %s212 = sphi 0, %s214
      %s215 = sphi 0, %s212
      %s216 = sphi 0, %s215
      %s232 = sphi 0, %s216
    $region4: #{tpu_custom_call.1} parent=1 // loop_header_branch
      %23 = sbr.rel (%p21) target = $region8
    $region5: #{tpu_custom_call.1} parent=1 // loop_body
      %s25 = ssub.s32 %s20, 1
      %s26 = ssub.s32 %s20, 2
      %s33 = sadd.s32 1, %s28
      %p34 = scmp.ge.s32.totalorder %s33, 1
      %s35 = scalar_select %p34, 0, %s33
      %s36 = sadd.s32 1, %s27
      %s37 = scalar_select %p34, %s36, %s27
      %p38 = scmp.ge.s32.totalorder %s37, 2
      %s39 = scalar_select %p38, 0, %s37
      %s41 = sadd.s32 %s40, 1
      %p44 = scmp.eq.s32.totalorder %s20, 1
      %p45 = scmp.ne.s32.totalorder %s40, %s42
      %p46 = scmp.eq.s32.totalorder %s20, 0
      %p47 = por %p45, %p46
      %p48 = scmp.ne.s32.totalorder %s40, %s42
      %p49 = scmp.eq.s32.totalorder %s25, 1
      %p50 = por %p48, %p49
      %p51 = scmp.ne.s32.totalorder %s42, %s43
      %p52 = scmp.eq.s32.totalorder %s25, 0
      %p53 = por %p51, %p52
      %p54 = scmp.ne.s32.totalorder %s42, %s43
      %p55 = scmp.eq.s32.totalorder %s26, 1
      %p56 = por %p54, %p55
      %p58 = scmp.ne.s32.totalorder %s43, %s57
      %p59 = scmp.eq.s32.totalorder %s26, 0
      %p60 = por %p58, %p59
      %s62 = sadd.s32 %s61, 1
      %p65 = scmp.eq.s32.totalorder %s20, 1
      %p66 = scmp.ne.s32.totalorder %s61, %s63
      %p67 = scmp.eq.s32.totalorder %s20, 0
      %p68 = por %p66, %p67
      %p69 = scmp.ne.s32.totalorder %s61, %s63
      %p70 = scmp.eq.s32.totalorder %s25, 1
      %p71 = por %p69, %p70
      %p72 = scmp.ne.s32.totalorder %s63, %s64
      %p73 = scmp.eq.s32.totalorder %s25, 0
      %p74 = por %p72, %p73
      %p75 = scmp.ne.s32.totalorder %s63, %s64
      %p76 = scmp.eq.s32.totalorder %s26, 1
      %p77 = por %p75, %p76
      %p79 = scmp.ne.s32.totalorder %s64, %s78
      %p80 = scmp.eq.s32.totalorder %s26, 0
      %p81 = por %p79, %p80
      %s83 = sadd.s32 %s82, 1
      %p86 = scmp.eq.s32.totalorder %s20, 1
      %p87 = scmp.ne.s32.totalorder %s82, %s84
      %p88 = scmp.eq.s32.totalorder %s20, 0
      %p89 = por %p87, %p88
      %p90 = scmp.ne.s32.totalorder %s82, %s84
      %p91 = scmp.eq.s32.totalorder %s25, 1
      %p92 = por %p90, %p91
      %p93 = scmp.ne.s32.totalorder %s84, %s85
      %p94 = scmp.eq.s32.totalorder %s25, 0
      %p95 = por %p93, %p94
      %p96 = scmp.ne.s32.totalorder %s84, %s85
      %p97 = scmp.eq.s32.totalorder %s26, 1
      %p98 = por %p96, %p97
      %p100 = scmp.ne.s32.totalorder %s85, %s99
      %p101 = scmp.eq.s32.totalorder %s26, 0
      %p102 = por %p100, %p101
      %s104 = sadd.s32 %s103, 1
      %p107 = scmp.eq.s32.totalorder %s20, 1
      %p108 = scmp.ne.s32.totalorder %s103, %s105
      %p109 = scmp.eq.s32.totalorder %s20, 0
      %p110 = por %p108, %p109
      %p111 = scmp.ne.s32.totalorder %s103, %s105
      %p112 = scmp.eq.s32.totalorder %s25, 1
      %p113 = por %p111, %p112
      %p114 = scmp.ne.s32.totalorder %s105, %s106
      %p115 = scmp.eq.s32.totalorder %s25, 0
      %p116 = por %p114, %p115
      %p117 = scmp.ne.s32.totalorder %s105, %s106
      %p118 = scmp.eq.s32.totalorder %s26, 1
      %p119 = por %p117, %p118
      %p121 = scmp.ne.s32.totalorder %s106, %s120
      %p122 = scmp.eq.s32.totalorder %s26, 0
      %p123 = por %p121, %p122
      %s124 = ssub.s32 %s27, %s39
      %s125 = ssub.s32 %s28, %s35
      %s126 = sor.u32 %s124, %s125
      %p127 = scmp.eq.s32.totalorder %s126, 0
      %s129 = sadd.s32 %s128, 1
      %s130 = scalar_select %p127, %s128, %s129
      %p133 = pneg %p127
      %p134 = scmp.eq.s32.totalorder %s20, 1
      %p135 = por %p133, %p134
      %p136 = scmp.ne.s32.totalorder %s128, %s131
      %p137 = scmp.eq.s32.totalorder %s20, 0
      %p138 = por %p136, %p137
      %p139 = scmp.ne.s32.totalorder %s128, %s131
      %p140 = scmp.eq.s32.totalorder %s25, 1
      %p141 = por %p139, %p140
      %p142 = scmp.ne.s32.totalorder %s131, %s132
      %p143 = scmp.eq.s32.totalorder %s25, 0
      %p144 = por %p142, %p143
      %p145 = scmp.ne.s32.totalorder %s131, %s132
      %p146 = scmp.eq.s32.totalorder %s26, 1
      %p147 = por %p145, %p146
      %p149 = scmp.ne.s32.totalorder %s132, %s148
      %p150 = scmp.eq.s32.totalorder %s26, 0
      %p151 = por %p149, %p150
      %s152 = ssub.s32 %s27, %s39
      %s153 = ssub.s32 %s28, %s35
      %s154 = sor.u32 %s152, %s153
      %p155 = scmp.eq.s32.totalorder %s154, 0
      %s157 = sadd.s32 %s156, 1
      %s158 = scalar_select %p155, %s156, %s157
      %p161 = pneg %p155
      %p162 = scmp.eq.s32.totalorder %s20, 1
      %p163 = por %p161, %p162
      %p164 = scmp.ne.s32.totalorder %s156, %s159
      %p165 = scmp.eq.s32.totalorder %s20, 0
      %p166 = por %p164, %p165
      %p167 = scmp.ne.s32.totalorder %s156, %s159
      %p168 = scmp.eq.s32.totalorder %s25, 1
      %p169 = por %p167, %p168
      %p170 = scmp.ne.s32.totalorder %s159, %s160
      %p171 = scmp.eq.s32.totalorder %s25, 0
      %p172 = por %p170, %p171
      %p173 = scmp.ne.s32.totalorder %s159, %s160
      %p174 = scmp.eq.s32.totalorder %s26, 1
      %p175 = por %p173, %p174
      %p177 = scmp.ne.s32.totalorder %s160, %s176
      %p178 = scmp.eq.s32.totalorder %s26, 0
      %p179 = por %p177, %p178
      %s180 = ssub.s32 %s27, %s39
      %s181 = ssub.s32 %s28, %s35
      %s182 = sor.u32 %s180, %s181
      %p183 = scmp.eq.s32.totalorder %s182, 0
      %s185 = sadd.s32 %s184, 1
      %s186 = scalar_select %p183, %s184, %s185
      %p189 = pneg %p183
      %p190 = scmp.eq.s32.totalorder %s20, 1
      %p191 = por %p189, %p190
      %p192 = scmp.ne.s32.totalorder %s184, %s187
      %p193 = scmp.eq.s32.totalorder %s20, 0
      %p194 = por %p192, %p193
      %p195 = scmp.ne.s32.totalorder %s184, %s187
      %p196 = scmp.eq.s32.totalorder %s25, 1
      %p197 = por %p195, %p196
      %p198 = scmp.ne.s32.totalorder %s187, %s188
      %p199 = scmp.eq.s32.totalorder %s25, 0
      %p200 = por %p198, %p199
      %p201 = scmp.ne.s32.totalorder %s187, %s188
      %p202 = scmp.eq.s32.totalorder %s26, 1
      %p203 = por %p201, %p202
      %p205 = scmp.ne.s32.totalorder %s188, %s204
      %p206 = scmp.eq.s32.totalorder %s26, 0
      %p207 = por %p205, %p206
      %s208 = ssub.s32 %s27, %s39
      %s209 = ssub.s32 %s28, %s35
      %s210 = sor.u32 %s208, %s209
      %p211 = scmp.eq.s32.totalorder %s210, 0
      %s213 = sadd.s32 %s212, 1
      %s214 = scalar_select %p211, %s212, %s213
      %p217 = pneg %p211
      %p218 = scmp.eq.s32.totalorder %s20, 1
      %p219 = por %p217, %p218
      %p220 = scmp.ne.s32.totalorder %s212, %s215
      %p221 = scmp.eq.s32.totalorder %s20, 0
      %p222 = por %p220, %p221
      %p223 = scmp.ne.s32.totalorder %s212, %s215
      %p224 = scmp.eq.s32.totalorder %s25, 1
      %p225 = por %p223, %p224
      %p226 = scmp.ne.s32.totalorder %s215, %s216
      %p227 = scmp.eq.s32.totalorder %s25, 0
      %p228 = por %p226, %p227
      %p229 = scmp.ne.s32.totalorder %s215, %s216
      %p230 = scmp.eq.s32.totalorder %s26, 1
      %p231 = por %p229, %p230
      %p233 = scmp.ne.s32.totalorder %s216, %s232
      %p234 = scmp.eq.s32.totalorder %s26, 0
      %p235 = por %p233, %p234
      %p236 = scmp.le.s32.totalorder 1, %s20
      %p237 = scmp.lt.s32.totalorder %s20, 3
      %p238 = pnand %p236, %p237
      %p239 = pneg %p238
      // Predicated region
      $region9: #{tpu_custom_call.1} parent=5 // pred_check
        _
      $region10: #{tpu_custom_call.1} parent=5 // pred_check_branch
        %241 = sbr.rel (%p238) target = $region12
      $region11: #{tpu_custom_call.1} parent=5 // pred_region
        %s242 = ssub.s32 %s20, 1
        // Predicated region
        $region13: #{tpu_custom_call.1} parent=11 // pred_check
          %p243 = pneg %p53
        $region14: #{tpu_custom_call.1} parent=11 // pred_check_branch
          %245 = sbr.rel (%p243) target = $region16
        $region15: #{tpu_custom_call.1} parent=11 // pred_region
          _
        $region16: #{tpu_custom_call.1} parent=11 // pred_fallthru
          _
        // Predicated region
        $region17: #{tpu_custom_call.1} parent=11 // pred_check
          %p246 = pneg %p74
        $region18: #{tpu_custom_call.1} parent=11 // pred_check_branch
          %248 = sbr.rel (%p246) target = $region20
        $region19: #{tpu_custom_call.1} parent=11 // pred_region
          _
        $region20: #{tpu_custom_call.1} parent=11 // pred_fallthru
          _
        // Predicated region
        $region21: #{tpu_custom_call.1} parent=11 // pred_check
          %p249 = pneg %p95
        $region22: #{tpu_custom_call.1} parent=11 // pred_check_branch
          %251 = sbr.rel (%p249) target = $region24
        $region23: #{tpu_custom_call.1} parent=11 // pred_region
          _
        $region24: #{tpu_custom_call.1} parent=11 // pred_fallthru
          _
        // Predicated region
        $region25: #{tpu_custom_call.1} parent=11 // pred_check
          %p252 = pneg %p116
        $region26: #{tpu_custom_call.1} parent=11 // pred_check_branch
          %254 = sbr.rel (%p252) target = $region28
        $region27: #{tpu_custom_call.1} parent=11 // pred_region
          _
        $region28: #{tpu_custom_call.1} parent=11 // pred_fallthru
          _
      $region12: #{tpu_custom_call.1} parent=5 // pred_fallthru
        _
      %p255 = scmp.lt.s32.totalorder %s20, 2
      // Predicated region
      $region29: #{tpu_custom_call.1} parent=5 // pred_check
        %p256 = pneg %p255
      $region30: #{tpu_custom_call.1} parent=5 // pred_check_branch
        %258 = sbr.rel (%p256) target = $region32
      $region31: #{tpu_custom_call.1} parent=5 // pred_region
        // Predicated region
        $region33: #{tpu_custom_call.1} parent=31 // pred_check
          %p259 = pneg %p138
        $region34: #{tpu_custom_call.1} parent=31 // pred_check_branch
          %261 = sbr.rel (%p259) target = $region36
        $region35: #{tpu_custom_call.1} parent=31 // pred_region
          %s262 = smul.u32 16, %s28
          %p263 = scmp.lt.s32.totalorder %s27, 1
          %s264 = scalar_select %p263, %s27, 1
          %p265 = scmp.lt.s32.totalorder %s262, 15
          %s266 = scalar_select %p265, %s262, 15
          %s267 = smul.addr %s264, 16
          %s268 = sadd.s32 %s266, %s267
          %s269 = smul.addr %s268, 4
          %s270 = scalar_lea.vmem %s4, %s269
          %s271 = smul.u32 16, %s28
        $region36: #{tpu_custom_call.1} parent=31 // pred_fallthru
          _
        // Predicated region
        $region37: #{tpu_custom_call.1} parent=31 // pred_check
          %p272 = pneg %p166
        $region38: #{tpu_custom_call.1} parent=31 // pred_check_branch
          %274 = sbr.rel (%p272) target = $region40
        $region39: #{tpu_custom_call.1} parent=31 // pred_region
          %s275 = smul.u32 16, %s28
          %p276 = scmp.lt.s32.totalorder %s27, 1
          %s277 = scalar_select %p276, %s27, 1
          %p278 = scmp.lt.s32.totalorder %s275, 15
          %s279 = scalar_select %p278, %s275, 15
          %s280 = smul.addr %s277, 16
          %s281 = sadd.s32 %s279, %s280
          %s282 = smul.addr %s281, 4
          %s283 = scalar_lea.vmem %s5, %s282
          %s284 = smul.u32 16, %s28
        $region40: #{tpu_custom_call.1} parent=31 // pred_fallthru
          _
      $region32: #{tpu_custom_call.1} parent=5 // pred_fallthru
        _
      %p285 = scmp.le.s32.totalorder 1, %s20
      %p286 = scmp.lt.s32.totalorder %s20, 3
      %p287 = pnand %p285, %p286
      %p288 = pneg %p287
      // Predicated region
      $region41: #{tpu_custom_call.1} parent=5 // pred_check
        _
      $region42: #{tpu_custom_call.1} parent=5 // pred_check_branch
        %290 = sbr.rel (%p287) target = $region44
      $region43: #{tpu_custom_call.1} parent=5 // pred_region
        %s291 = ssub.s32 %s20, 1
        %p292 = pneg %p53
        %p293 = pneg %p50
        %p294 = pneg %p74
        %p295 = pneg %p71
        %p296 = pneg %p95
        %p297 = pneg %p92
        %p298 = pneg %p116
        %p299 = pneg %p113
        %s300 = smul.u32 16, %s30
        %p301 = scmp.lt.s32.totalorder %s29, 1
        %s302 = scalar_select %p301, %s29, 1
        %p303 = scmp.lt.s32.totalorder %s300, 15
        %s304 = scalar_select %p303, %s300, 15
        %s305 = smul.addr %s302, 16
        %s306 = sadd.s32 %s304, %s305
        %s307 = smul.addr %s306, 4
        %s308 = scalar_lea.vmem %s4, %s307
        %p309 = pneg %p144
        %p310 = pneg %p141
        %s311 = smul.u32 16, %s30
        %p312 = scmp.lt.s32.totalorder %s29, 1
        %s313 = scalar_select %p312, %s29, 1
        %p314 = scmp.lt.s32.totalorder %s311, 15
        %s315 = scalar_select %p314, %s311, 15
        %s316 = smul.addr %s313, 16
        %s317 = sadd.s32 %s315, %s316
        %s318 = smul.addr %s317, 4
        %s319 = scalar_lea.vmem %s5, %s318
        %p320 = pneg %p172
        %p321 = pneg %p169
        %p322 = pneg %p200
        %p323 = pneg %p197
        %s324 = sand.u32 %s187, 1
        %s325 = scalar_lea.sflag [#allocation3], %s324
        %s326 = sand.u32 %s187, 1
        %s327 = smul.addr %s326, 64
        %s328 = scalar_lea.vmem [#allocation2], %s327
        %p329 = pneg %p228
        %p330 = pneg %p225
        %s331 = sand.u32 %s215, 1
        %s332 = scalar_lea.sflag [#allocation5], %s331
        %s333 = sand.u32 %s215, 1
        %s334 = smul.addr %s333, 64
        %s335 = scalar_lea.vmem [#allocation4], %s334
        %s336 = smul.u32 16, %s30
        %p337 = scmp.lt.s32.totalorder %s29, 1
        %s338 = scalar_select %p337, %s29, 1
        %p339 = scmp.lt.s32.totalorder %s336, 15
        %s340 = scalar_select %p339, %s336, 15
        %s341 = smul.addr %s338, 16
        %s342 = sadd.s32 %s340, %s341
        %s343 = smul.addr %s342, 4
        %s344 = scalar_lea.vmem %s4, %s343
        %s345 = smul.u32 16, %s30
        %s346 = smul.u32 16, %s30
        %p347 = scmp.lt.s32.totalorder %s29, 1
        %s348 = scalar_select %p347, %s29, 1
        %p349 = scmp.lt.s32.totalorder %s346, 15
        %s350 = scalar_select %p349, %s346, 15
        %s351 = smul.addr %s348, 16
        %s352 = sadd.s32 %s350, %s351
        %s353 = smul.addr %s352, 4
        %s354 = scalar_lea.vmem %s5, %s353
        %s355 = smul.u32 16, %s30
        %s356 = smul.u32 16, %s30
        %s357 = smul.u32 16, %s30
        %v359 = vld [vmem:[%s344] sm:$0xf]
        %v360 = vld [vmem:[%s344 + $0x4] sm:$0xf]
        %v361 = vld [vmem:[%s344 + $0x8] sm:$0xf]
        %v362 = vld [vmem:[%s344 + $0xc] sm:$0xf]
        %v363 = vld [vmem:[%s344 + $0x10] sm:$0xf]
        %v364 = vld [vmem:[%s344 + $0x14] sm:$0xf]
        %v365 = vld [vmem:[%s344 + $0x18] sm:$0xf]
        %v366 = vld [vmem:[%s344 + $0x1c] sm:$0xf]
        %v367 = vld [vmem:[%s344 + $0x20] sm:$0xf]
        %v368 = vld [vmem:[%s344 + $0x24] sm:$0xf]
        %v369 = vld [vmem:[%s344 + $0x28] sm:$0xf]
        %v370 = vld [vmem:[%s344 + $0x2c] sm:$0xf]
        %v371 = vld [vmem:[%s344 + $0x30] sm:$0xf]
        %v372 = vld [vmem:[%s344 + $0x34] sm:$0xf]
        %v373 = vld [vmem:[%s344 + $0x38] sm:$0xf]
        %v374 = vld [vmem:[%s344 + $0x3c] sm:$0xf]
        %v375 = vld [vmem:[%s0] sm:$0xf]
        %v376 = vld [vmem:[%s0 + $0x4] sm:$0xf]
        %v377 = vld [vmem:[%s0 + $0x8] sm:$0xf]
        %v378 = vld [vmem:[%s0 + $0xc] sm:$0xf]
        %v379 = vld [vmem:[%s1] sm:$0x1]
        %v381 = vlaneseq
        %v382 = vshrl.u32 %v381, 7
        %v383 = vsub.s32 0, %v382
        %v384 = vrot.slane %v379, %v383
        %v402 = vunpack.c.l.b16 %v359
        %v403 = vunpack.c.l.b16 %v360
        %v404 = vunpack.c.l.b16 %v361
        %v405 = vunpack.c.l.b16 %v362
        %v406 = vunpack.c.l.b16 %v363
        %v407 = vunpack.c.l.b16 %v364
        %v408 = vunpack.c.l.b16 %v365
        %v409 = vunpack.c.l.b16 %v366
        %v410 = vunpack.c.l.b16 %v367
        %v411 = vunpack.c.l.b16 %v368
        %v412 = vunpack.c.l.b16 %v369
        %v413 = vunpack.c.l.b16 %v370
        %v414 = vunpack.c.l.b16 %v371
        %v415 = vunpack.c.l.b16 %v372
        %v416 = vunpack.c.l.b16 %v373
        %v417 = vunpack.c.l.b16 %v374
        %v418 = vpack.c.b16 %v403, %v402
        %v419 = vpack.c.b16 %v405, %v404
        %v420 = vpack.c.b16 %v407, %v406
        %v421 = vpack.c.b16 %v409, %v408
        %v422 = vpack.c.b16 %v411, %v410
        %v423 = vpack.c.b16 %v413, %v412
        %v424 = vpack.c.b16 %v415, %v414
        %v425 = vpack.c.b16 %v417, %v416
        %v430 = vunpack.c.l.b16 %v375
        %v431 = vunpack.c.l.b16 %v376
        %v432 = vunpack.c.l.b16 %v377
        %v433 = vunpack.c.l.b16 %v378
        %v434 = vpack.c.b16 %v431, %v430
        %v435 = vpack.c.b16 %v433, %v432
        %vm438 = vcmask 261120
        %v440 = vsel %vm438, %v418, 0
        %v443 = vsel %vm438, %v419, 0
        %v446 = vsel %vm438, %v420, 0
        %v449 = vsel %vm438, %v421, 0
        %v452 = vsel %vm438, %v422, 0
        %v455 = vsel %vm438, %v423, 0
        %v458 = vsel %vm438, %v424, 0
        %v461 = vsel %vm438, %v425, 0
        %463 = vmatprep.subr.bf16.mxu0 0
        %464 = vmatpush1.bf16.msra.mxu0 %v434
        %465 = vmatprep.subr.bf16.mxu0 0
        %466 = vmatpush1.bf16.msra.mxu0 %v435
        %467 = vmatprep.subr.bf16.mxu0 0
        %468 = vmatpush1.bf16.msra.mxu0 0
        %469 = vmatprep.subr.bf16.mxu0 0
        %470 = vmatpush1.bf16.msra.mxu0 0
        %471 = vmatprep.subr.bf16.mxu0 0
        %472 = vmatpush1.bf16.msra.mxu0 0
        %473 = vmatprep.subr.bf16.mxu0 0
        %474 = vmatpush1.bf16.msra.mxu0 0
        %475 = vmatprep.subr.bf16.mxu0 0
        %476 = vmatpush1.bf16.msra.mxu0 0
        %477 = vmatprep.subr.bf16.mxu0 0
        %478 = vmatpush1.bf16.msra.mxu0 0
        %479 = vmatprep.subr.bf16.mxu0 0
        %480 = vmatpush1.bf16.msra.mxu0 0
        %481 = vmatprep.subr.bf16.mxu0 0
        %482 = vmatpush1.bf16.msra.mxu0 0
        %483 = vmatprep.subr.bf16.mxu0 0
        %484 = vmatpush1.bf16.msra.mxu0 0
        %485 = vmatprep.subr.bf16.mxu0 0
        %486 = vmatpush1.bf16.msra.mxu0 0
        %487 = vmatprep.subr.bf16.mxu0 0
        %488 = vmatpush1.bf16.msra.mxu0 0
        %489 = vmatprep.subr.bf16.mxu0 0
        %490 = vmatpush1.bf16.msra.mxu0 0
        %491 = vmatprep.subr.bf16.mxu0 0
        %492 = vmatpush1.bf16.msra.mxu0 0
        %493 = vmatprep.subr.bf16.mxu0 0
        %494 = vmatpush1.bf16.msra.mxu0 0
        %495 = vmatprep.mubr.bf16.mxu0 0
        %496 = vmatmul.mubr.bf16.gmra.mrb[0].mxu0 %v440
        %v497 = vpop.f32.mrb[0].mxu0
        %v498 = vadd.f32 %v384, %v497
        %v499 = vpop.f32.mrb[0].mxu0
        %v500 = vpop.f32.mrb[0].mxu0
        %v501 = vadd.f32 %v384, %v500
        %v502 = vpop.f32.mrb[0].mxu0
        %503 = vmatprep.mubr.bf16.mxu0 0
        %504 = vmatmul.mubr.bf16.gmra.mrb[0].mxu0 %v443
        %v505 = vpop.f32.mrb[0].mxu0
        %v506 = vadd.f32 %v384, %v505
        %v507 = vpop.f32.mrb[0].mxu0
        %v508 = vpop.f32.mrb[0].mxu0
        %v509 = vadd.f32 %v384, %v508
        %v510 = vpop.f32.mrb[0].mxu0
        %511 = vmatprep.mubr.bf16.mxu0 0
        %512 = vmatmul.mubr.bf16.gmra.mrb[0].mxu0 %v446
        %v513 = vpop.f32.mrb[0].mxu0
        %v514 = vadd.f32 %v384, %v513
        %v515 = vpop.f32.mrb[0].mxu0
        %v516 = vpop.f32.mrb[0].mxu0
        %v517 = vadd.f32 %v384, %v516
        %v518 = vpop.f32.mrb[0].mxu0
        %519 = vmatprep.mubr.bf16.mxu0 0
        %520 = vmatmul.mubr.bf16.gmra.mrb[0].mxu0 %v449
        %v521 = vpop.f32.mrb[0].mxu0
        %v522 = vadd.f32 %v384, %v521
        %v523 = vpop.f32.mrb[0].mxu0
        %v524 = vpop.f32.mrb[0].mxu0
        %v525 = vadd.f32 %v384, %v524
        %v526 = vpop.f32.mrb[0].mxu0
        %527 = vmatprep.mubr.bf16.mxu0 0
        %528 = vmatmul.mubr.bf16.gmra.mrb[0].mxu0 %v452
        %v529 = vpop.f32.mrb[0].mxu0
        %v530 = vadd.f32 %v384, %v529
        %v531 = vpop.f32.mrb[0].mxu0
        %v532 = vpop.f32.mrb[0].mxu0
        %v533 = vadd.f32 %v384, %v532
        %v534 = vpop.f32.mrb[0].mxu0
        %535 = vmatprep.mubr.bf16.mxu0 0
        %536 = vmatmul.mubr.bf16.gmra.mrb[0].mxu0 %v455
        %v537 = vpop.f32.mrb[0].mxu0
        %v538 = vadd.f32 %v384, %v537
        %v539 = vpop.f32.mrb[0].mxu0
        %v540 = vpop.f32.mrb[0].mxu0
        %v541 = vadd.f32 %v384, %v540
        %v542 = vpop.f32.mrb[0].mxu0
        %543 = vmatprep.mubr.bf16.mxu0 0
        %544 = vmatmul.mubr.bf16.gmra.mrb[0].mxu0 %v458
        %v545 = vpop.f32.mrb[0].mxu0
        %v546 = vadd.f32 %v384, %v545
        %v547 = vpop.f32.mrb[0].mxu0
        %v548 = vpop.f32.mrb[0].mxu0
        %v549 = vadd.f32 %v384, %v548
        %v550 = vpop.f32.mrb[0].mxu0
        %551 = vmatprep.mubr.bf16.mxu0 0
        %552 = vmatmul.mubr.bf16.gmra.mrb[0].mxu0 %v461
        %v553 = vpop.f32.mrb[0].mxu0
        %v554 = vadd.f32 %v384, %v553
        %v555 = vpop.f32.mrb[0].mxu0
        %v556 = vpop.f32.mrb[0].mxu0
        %v557 = vadd.f32 %v384, %v556
        %v558 = vpop.f32.mrb[0].mxu0
        %559 = vdwg.mxu0
        %v560 = vld [vmem:[%s354] sm:$0xf]
        %v561 = vld [vmem:[%s354 + $0x4] sm:$0xf]
        %v562 = vld [vmem:[%s354 + $0x8] sm:$0xf]
        %v563 = vld [vmem:[%s354 + $0xc] sm:$0xf]
        %v564 = vld [vmem:[%s354 + $0x10] sm:$0xf]
        %v565 = vld [vmem:[%s354 + $0x14] sm:$0xf]
        %v566 = vld [vmem:[%s354 + $0x18] sm:$0xf]
        %v567 = vld [vmem:[%s354 + $0x1c] sm:$0xf]
        %v568 = vld [vmem:[%s354 + $0x20] sm:$0xf]
        %v569 = vld [vmem:[%s354 + $0x24] sm:$0xf]
        %v570 = vld [vmem:[%s354 + $0x28] sm:$0xf]
        %v571 = vld [vmem:[%s354 + $0x2c] sm:$0xf]
        %v572 = vld [vmem:[%s354 + $0x30] sm:$0xf]
        %v573 = vld [vmem:[%s354 + $0x34] sm:$0xf]
        %v574 = vld [vmem:[%s354 + $0x38] sm:$0xf]
        %v575 = vld [vmem:[%s354 + $0x3c] sm:$0xf]
        %v576 = vld [vmem:[%s2] sm:$0xf]
        %v577 = vld [vmem:[%s2 + $0x4] sm:$0xf]
        %v578 = vld [vmem:[%s2 + $0x8] sm:$0xf]
        %v579 = vld [vmem:[%s2 + $0xc] sm:$0xf]
        %v580 = vld [vmem:[%s3] sm:$0x1]
        %v582 = vlaneseq
        %v583 = vshrl.u32 %v582, 7
        %v584 = vsub.s32 0, %v583
        %v585 = vrot.slane %v580, %v584
        %v603 = vunpack.c.l.b16 %v560
        %v604 = vunpack.c.l.b16 %v561
        %v605 = vunpack.c.l.b16 %v562
        %v606 = vunpack.c.l.b16 %v563
        %v607 = vunpack.c.l.b16 %v564
        %v608 = vunpack.c.l.b16 %v565
        %v609 = vunpack.c.l.b16 %v566
        %v610 = vunpack.c.l.b16 %v567
        %v611 = vunpack.c.l.b16 %v568
        %v612 = vunpack.c.l.b16 %v569
        %v613 = vunpack.c.l.b16 %v570
        %v614 = vunpack.c.l.b16 %v571
        %v615 = vunpack.c.l.b16 %v572
        %v616 = vunpack.c.l.b16 %v573
        %v617 = vunpack.c.l.b16 %v574
        %v618 = vunpack.c.l.b16 %v575
        %v619 = vpack.c.b16 %v604, %v603
        %v620 = vpack.c.b16 %v606, %v605
        %v621 = vpack.c.b16 %v608, %v607
        %v622 = vpack.c.b16 %v610, %v609
        %v623 = vpack.c.b16 %v612, %v611
        %v624 = vpack.c.b16 %v614, %v613
        %v625 = vpack.c.b16 %v616, %v615
        %v626 = vpack.c.b16 %v618, %v617
        %v631 = vunpack.c.l.b16 %v576
        %v632 = vunpack.c.l.b16 %v577
        %v633 = vunpack.c.l.b16 %v578
        %v634 = vunpack.c.l.b16 %v579
        %v635 = vpack.c.b16 %v632, %v631
        %v636 = vpack.c.b16 %v634, %v633
        %v640 = vsel %vm438, %v619, 0
        %v643 = vsel %vm438, %v620, 0
        %v646 = vsel %vm438, %v621, 0
        %v649 = vsel %vm438, %v622, 0
        %v652 = vsel %vm438, %v623, 0
        %v655 = vsel %vm438, %v624, 0
        %v658 = vsel %vm438, %v625, 0
        %v661 = vsel %vm438, %v626, 0
        %663 = vmatprep.subr.bf16.mxu0 0
        %664 = vmatpush1.bf16.msra.mxu0 %v635
        %665 = vmatprep.subr.bf16.mxu0 0
        %666 = vmatpush1.bf16.msra.mxu0 %v636
        %667 = vmatprep.subr.bf16.mxu0 0
        %668 = vmatpush1.bf16.msra.mxu0 0
        %669 = vmatprep.subr.bf16.mxu0 0
        %670 = vmatpush1.bf16.msra.mxu0 0
        %671 = vmatprep.subr.bf16.mxu0 0
        %672 = vmatpush1.bf16.msra.mxu0 0
        %673 = vmatprep.subr.bf16.mxu0 0
        %674 = vmatpush1.bf16.msra.mxu0 0
        %675 = vmatprep.subr.bf16.mxu0 0
        %676 = vmatpush1.bf16.msra.mxu0 0
        %677 = vmatprep.subr.bf16.mxu0 0
        %678 = vmatpush1.bf16.msra.mxu0 0
        %679 = vmatprep.subr.bf16.mxu0 0
        %680 = vmatpush1.bf16.msra.mxu0 0
        %681 = vmatprep.subr.bf16.mxu0 0
        %682 = vmatpush1.bf16.msra.mxu0 0
        %683 = vmatprep.subr.bf16.mxu0 0
        %684 = vmatpush1.bf16.msra.mxu0 0
        %685 = vmatprep.subr.bf16.mxu0 0
        %686 = vmatpush1.bf16.msra.mxu0 0
        %687 = vmatprep.subr.bf16.mxu0 0
        %688 = vmatpush1.bf16.msra.mxu0 0
        %689 = vmatprep.subr.bf16.mxu0 0
        %690 = vmatpush1.bf16.msra.mxu0 0
        %691 = vmatprep.subr.bf16.mxu0 0
        %692 = vmatpush1.bf16.msra.mxu0 0
        %693 = vmatprep.subr.bf16.mxu0 0
        %694 = vmatpush1.bf16.msra.mxu0 0
        %695 = vmatprep.mubr.bf16.mxu0 0
        %696 = vmatmul.mubr.bf16.gmra.mrb[0].mxu0 %v640
        %v697 = vpop.f32.mrb[0].mxu0
        %v698 = vadd.f32 %v585, %v697
        %v699 = vpop.f32.mrb[0].mxu0
        %v700 = vpop.f32.mrb[0].mxu0
        %v701 = vadd.f32 %v585, %v700
        %v702 = vpop.f32.mrb[0].mxu0
        %703 = vmatprep.mubr.bf16.mxu0 0
        %704 = vmatmul.mubr.bf16.gmra.mrb[0].mxu0 %v643
        %v705 = vpop.f32.mrb[0].mxu0
        %v706 = vadd.f32 %v585, %v705
        %v707 = vpop.f32.mrb[0].mxu0
        %v708 = vpop.f32.mrb[0].mxu0
        %v709 = vadd.f32 %v585, %v708
        %v710 = vpop.f32.mrb[0].mxu0
        %711 = vmatprep.mubr.bf16.mxu0 0
        %712 = vmatmul.mubr.bf16.gmra.mrb[0].mxu0 %v646
        %v713 = vpop.f32.mrb[0].mxu0
        %v714 = vadd.f32 %v585, %v713
        %v715 = vpop.f32.mrb[0].mxu0
        %v716 = vpop.f32.mrb[0].mxu0
        %v717 = vadd.f32 %v585, %v716
        %v718 = vpop.f32.mrb[0].mxu0
        %719 = vmatprep.mubr.bf16.mxu0 0
        %720 = vmatmul.mubr.bf16.gmra.mrb[0].mxu0 %v649
        %v721 = vpop.f32.mrb[0].mxu0
        %v722 = vadd.f32 %v585, %v721
        %v723 = vpop.f32.mrb[0].mxu0
        %v724 = vpop.f32.mrb[0].mxu0
        %v725 = vadd.f32 %v585, %v724
        %v726 = vpop.f32.mrb[0].mxu0
        %727 = vmatprep.mubr.bf16.mxu0 0
        %728 = vmatmul.mubr.bf16.gmra.mrb[0].mxu0 %v652
        %v729 = vpop.f32.mrb[0].mxu0
        %v730 = vadd.f32 %v585, %v729
        %v731 = vpop.f32.mrb[0].mxu0
        %v732 = vpop.f32.mrb[0].mxu0
        %v733 = vadd.f32 %v585, %v732
        %v734 = vpop.f32.mrb[0].mxu0
        %735 = vmatprep.mubr.bf16.mxu0 0
        %736 = vmatmul.mubr.bf16.gmra.mrb[0].mxu0 %v655
        %v737 = vpop.f32.mrb[0].mxu0
        %v738 = vadd.f32 %v585, %v737
        %v739 = vpop.f32.mrb[0].mxu0
        %v740 = vpop.f32.mrb[0].mxu0
        %v741 = vadd.f32 %v585, %v740
        %v742 = vpop.f32.mrb[0].mxu0
        %743 = vmatprep.mubr.bf16.mxu0 0
        %744 = vmatmul.mubr.bf16.gmra.mrb[0].mxu0 %v658
        %v745 = vpop.f32.mrb[0].mxu0
        %v746 = vadd.f32 %v585, %v745
        %v747 = vpop.f32.mrb[0].mxu0
        %v748 = vpop.f32.mrb[0].mxu0
        %v749 = vadd.f32 %v585, %v748
        %v750 = vpop.f32.mrb[0].mxu0
        %751 = vmatprep.mubr.bf16.mxu0 0
        %752 = vmatmul.mubr.bf16.gmra.mrb[0].mxu0 %v661
        %v753 = vpop.f32.mrb[0].mxu0
        %v754 = vadd.f32 %v585, %v753
        %v755 = vpop.f32.mrb[0].mxu0
        %v756 = vpop.f32.mrb[0].mxu0
        %v757 = vadd.f32 %v585, %v756
        %v758 = vpop.f32.mrb[0].mxu0
        %759 = vdwg.mxu0
        %v760 = vpack.c.bf16 %v501, %v498
        %v761 = vpack.c.bf16 %v509, %v506
        %v762 = vpack.c.bf16 %v517, %v514
        %v763 = vpack.c.bf16 %v525, %v522
        %v764 = vpack.c.bf16 %v533, %v530
        %v765 = vpack.c.bf16 %v541, %v538
        %v766 = vpack.c.bf16 %v549, %v546
        %v767 = vpack.c.bf16 %v557, %v554
        %v776 = vunpack.c.l.b16 %v760
        %v777 = vunpack.c.h.b16 %v760
        %v778 = vunpack.c.l.b16 %v761
        %v779 = vunpack.c.h.b16 %v761
        %v780 = vunpack.c.l.b16 %v762
        %v781 = vunpack.c.h.b16 %v762
        %v782 = vunpack.c.l.b16 %v763
        %v783 = vunpack.c.h.b16 %v763
        %v784 = vunpack.c.l.b16 %v764
        %v785 = vunpack.c.h.b16 %v764
        %v786 = vunpack.c.l.b16 %v765
        %v787 = vunpack.c.h.b16 %v765
        %v788 = vunpack.c.l.b16 %v766
        %v789 = vunpack.c.h.b16 %v766
        %v790 = vunpack.c.l.b16 %v767
        %v791 = vunpack.c.h.b16 %v767
        %v792 = vpack.c.b16 %v776, %v776
        %v793 = vpack.c.b16 %v777, %v777
        %v794 = vpack.c.b16 %v778, %v778
        %v795 = vpack.c.b16 %v779, %v779
        %v796 = vpack.c.b16 %v780, %v780
        %v797 = vpack.c.b16 %v781, %v781
        %v798 = vpack.c.b16 %v782, %v782
        %v799 = vpack.c.b16 %v783, %v783
        %v800 = vpack.c.b16 %v784, %v784
        %v801 = vpack.c.b16 %v785, %v785
        %v802 = vpack.c.b16 %v786, %v786
        %v803 = vpack.c.b16 %v787, %v787
        %v804 = vpack.c.b16 %v788, %v788
        %v805 = vpack.c.b16 %v789, %v789
        %v806 = vpack.c.b16 %v790, %v790
        %v807 = vpack.c.b16 %v791, %v791
        %824 = vst [vmem:[%s328] sm:$0xf] %v792
        %825 = vst [vmem:[%s328 + $0x4] sm:$0xf] %v793
        %826 = vst [vmem:[%s328 + $0x8] sm:$0xf] %v794
        %827 = vst [vmem:[%s328 + $0xc] sm:$0xf] %v795
        %828 = vst [vmem:[%s328 + $0x10] sm:$0xf] %v796
        %829 = vst [vmem:[%s328 + $0x14] sm:$0xf] %v797
        %830 = vst [vmem:[%s328 + $0x18] sm:$0xf] %v798
        %831 = vst [vmem:[%s328 + $0x1c] sm:$0xf] %v799
        %832 = vst [vmem:[%s328 + $0x20] sm:$0xf] %v800
        %833 = vst [vmem:[%s328 + $0x24] sm:$0xf] %v801
        %834 = vst [vmem:[%s328 + $0x28] sm:$0xf] %v802
        %835 = vst [vmem:[%s328 + $0x2c] sm:$0xf] %v803
        %836 = vst [vmem:[%s328 + $0x30] sm:$0xf] %v804
        %837 = vst [vmem:[%s328 + $0x34] sm:$0xf] %v805
        %838 = vst [vmem:[%s328 + $0x38] sm:$0xf] %v806
        %839 = vst [vmem:[%s328 + $0x3c] sm:$0xf] %v807
        %v840 = vpack.c.bf16 %v701, %v698
        %v841 = vpack.c.bf16 %v709, %v706
        %v842 = vpack.c.bf16 %v717, %v714
        %v843 = vpack.c.bf16 %v725, %v722
        %v844 = vpack.c.bf16 %v733, %v730
        %v845 = vpack.c.bf16 %v741, %v738
        %v846 = vpack.c.bf16 %v749, %v746
        %v847 = vpack.c.bf16 %v757, %v754
        %v856 = vunpack.c.l.b16 %v840
        %v857 = vunpack.c.h.b16 %v840
        %v858 = vunpack.c.l.b16 %v841
        %v859 = vunpack.c.h.b16 %v841
        %v860 = vunpack.c.l.b16 %v842
        %v861 = vunpack.c.h.b16 %v842
        %v862 = vunpack.c.l.b16 %v843
        %v863 = vunpack.c.h.b16 %v843
        %v864 = vunpack.c.l.b16 %v844
        %v865 = vunpack.c.h.b16 %v844
        %v866 = vunpack.c.l.b16 %v845
        %v867 = vunpack.c.h.b16 %v845
        %v868 = vunpack.c.l.b16 %v846
        %v869 = vunpack.c.h.b16 %v846
        %v870 = vunpack.c.l.b16 %v847
        %v871 = vunpack.c.h.b16 %v847
        %v872 = vpack.c.b16 %v856, %v856
        %v873 = vpack.c.b16 %v857, %v857
        %v874 = vpack.c.b16 %v858, %v858
        %v875 = vpack.c.b16 %v859, %v859
        %v876 = vpack.c.b16 %v860, %v860
        %v877 = vpack.c.b16 %v861, %v861
        %v878 = vpack.c.b16 %v862, %v862
        %v879 = vpack.c.b16 %v863, %v863
        %v880 = vpack.c.b16 %v864, %v864
        %v881 = vpack.c.b16 %v865, %v865
        %v882 = vpack.c.b16 %v866, %v866
        %v883 = vpack.c.b16 %v867, %v867
        %v884 = vpack.c.b16 %v868, %v868
        %v885 = vpack.c.b16 %v869, %v869
        %v886 = vpack.c.b16 %v870, %v870
        %v887 = vpack.c.b16 %v871, %v871
        %904 = vst [vmem:[%s335] sm:$0xf] %v872
        %905 = vst [vmem:[%s335 + $0x4] sm:$0xf] %v873
        %906 = vst [vmem:[%s335 + $0x8] sm:$0xf] %v874
        %907 = vst [vmem:[%s335 + $0xc] sm:$0xf] %v875
        %908 = vst [vmem:[%s335 + $0x10] sm:$0xf] %v876
        %909 = vst [vmem:[%s335 + $0x14] sm:$0xf] %v877
        %910 = vst [vmem:[%s335 + $0x18] sm:$0xf] %v878
        %911 = vst [vmem:[%s335 + $0x1c] sm:$0xf] %v879
        %912 = vst [vmem:[%s335 + $0x20] sm:$0xf] %v880
        %913 = vst [vmem:[%s335 + $0x24] sm:$0xf] %v881
        %914 = vst [vmem:[%s335 + $0x28] sm:$0xf] %v882
        %915 = vst [vmem:[%s335 + $0x2c] sm:$0xf] %v883
        %916 = vst [vmem:[%s335 + $0x30] sm:$0xf] %v884
        %917 = vst [vmem:[%s335 + $0x34] sm:$0xf] %v885
        %918 = vst [vmem:[%s335 + $0x38] sm:$0xf] %v886
        %919 = vst [vmem:[%s335 + $0x3c] sm:$0xf] %v887
        %s920 = sand.u32 %s187, 1
        %s921 = scalar_lea.sflag [#allocation3], %s920
        %s922 = sand.u32 %s187, 1
        %s923 = smul.addr %s922, 64
        %s924 = scalar_lea.vmem [#allocation2], %s923
        %s925 = sand.u32 %s215, 1
        %s926 = scalar_lea.sflag [#allocation5], %s925
        %s927 = sand.u32 %s215, 1
        %s928 = smul.addr %s927, 64
        %s929 = scalar_lea.vmem [#allocation4], %s928
        // Predicated region
        $region45: #{tpu_custom_call.1} parent=43 // pred_check
          %p930 = pneg %p197
        $region46: #{tpu_custom_call.1} parent=43 // pred_check_branch
          %932 = sbr.rel (%p930) target = $region48
        $region47: #{tpu_custom_call.1} parent=43 // pred_region
          %s933 = smul.u32 16, %s30
          %s935 = ssub.s32 1024, 1024
          %936 = vsyncadd %s921, %s935
          %s937 = smul.addr %s29, 16
          %s938 = sadd.s32 %s933, %s937
          %s939 = smul.addr %s938, 64
          %s940 = scalar_lea.hbm %s6, %s939
          %s941 = sshll.u32 %s924, 4
          %s942 = int_to_ptr.vmem [resolvable:$true] %s941
          %947 = dma.vmem_to_hbm [thread:$0]  %s942, 1024, %s940, %s921, 64, 64, 4
        $region48: #{tpu_custom_call.1} parent=43 // pred_fallthru
          _
        // Predicated region
        $region49: #{tpu_custom_call.1} parent=43 // pred_check
          %p948 = pneg %p225
        $region50: #{tpu_custom_call.1} parent=43 // pred_check_branch
          %950 = sbr.rel (%p948) target = $region52
        $region51: #{tpu_custom_call.1} parent=43 // pred_region
          %s951 = smul.u32 16, %s30
          %s953 = ssub.s32 1024, 1024
          %954 = vsyncadd %s926, %s953
          %s955 = smul.addr %s29, 16
          %s956 = sadd.s32 %s951, %s955
          %s957 = smul.addr %s956, 64
          %s958 = scalar_lea.hbm %s7, %s957
          %s959 = sshll.u32 %s929, 4
          %s960 = int_to_ptr.vmem [resolvable:$true] %s959
          %965 = dma.vmem_to_hbm [thread:$0]  %s960, 1024, %s958, %s926, 64, 64, 4
        $region52: #{tpu_custom_call.1} parent=43 // pred_fallthru
          _
      $region44: #{tpu_custom_call.1} parent=5 // pred_fallthru
        _
      %p966 = scmp.le.s32.totalorder 2, %s20
      // Predicated region
      $region53: #{tpu_custom_call.1} parent=5 // pred_check
        %p967 = pneg %p966
      $region54: #{tpu_custom_call.1} parent=5 // pred_check_branch
        %969 = sbr.rel (%p967) target = $region56
      $region55: #{tpu_custom_call.1} parent=5 // pred_region
        %s970 = ssub.s32 %s20, 2
        // Predicated region
        $region57: #{tpu_custom_call.1} parent=55 // pred_check
          %p971 = pneg %p203
        $region58: #{tpu_custom_call.1} parent=55 // pred_check_branch
          %973 = sbr.rel (%p971) target = $region60
        $region59: #{tpu_custom_call.1} parent=55 // pred_region
          %s974 = sand.u32 %s188, 1
          %s975 = scalar_lea.sflag [#allocation3], %s974
          %s976 = sand.u32 %s188, 1
          %s977 = smul.addr %s976, 64
          %s978 = scalar_lea.vmem [#allocation2], %s977
          %979 = dma.done %s975, 1024
        $region60: #{tpu_custom_call.1} parent=55 // pred_fallthru
          _
        // Predicated region
        $region61: #{tpu_custom_call.1} parent=55 // pred_check
          %p980 = pneg %p231
        $region62: #{tpu_custom_call.1} parent=55 // pred_check_branch
          %982 = sbr.rel (%p980) target = $region64
        $region63: #{tpu_custom_call.1} parent=55 // pred_region
          %s983 = sand.u32 %s216, 1
          %s984 = scalar_lea.sflag [#allocation5], %s983
          %s985 = sand.u32 %s216, 1
          %s986 = smul.addr %s985, 64
          %s987 = scalar_lea.vmem [#allocation4], %s986
          %988 = dma.done %s984, 1024
        $region64: #{tpu_custom_call.1} parent=55 // pred_fallthru
          _
      $region56: #{tpu_custom_call.1} parent=5 // pred_fallthru
        _
    $region6: #{tpu_custom_call.1} parent=1 // loop_footer
      %s24 = sadd.s32 1, %s20
    $region7: #{tpu_custom_call.1} parent=1 // loop_footer_branch
      %19 = sbr.rel target = $region3
    $region8: #{tpu_custom_call.1} parent=1 // loop_exit
      _
    %989 = vsyncpa [#allocation3], 1
    %s990 = scalar_lea.sflag [#allocation3], 1
    %991 = vsyncpa %s990, 1
    %992 = vsyncpa [#allocation5], 1
    %s993 = scalar_lea.sflag [#allocation5], 1
    %994 = vsyncpa %s993, 1

</llo_original>
